<compile_context>
chip_gen: v7x
topology: tpu7x:2x2x1
jax: 0.10.0
libtpu: 0.0.40
codegen_flags: <defaults>
</compile_context>

<pallas_src>
import jax
import jax.numpy as jnp
from jax import lax
from jax.experimental import pallas as pl
from jax.experimental.pallas import tpu as pltpu


# ----------------------------------------------------------------------------
# Path A: small-vocab one-hot MXU matmul.
# ----------------------------------------------------------------------------
def _emb_onehot_kernel(ids_ref, emb_ref, out_ref):
    # ids_ref : VMEM (token_block, 1) int32
    # emb_ref : VMEM (vocab, hidden_block)
    # out_ref : VMEM (token_block, hidden_block)
    tb = out_ref.shape[0]
    vocab = emb_ref.shape[0]

    ids = ids_ref[...]                                          # (tb, 1)
    iota = lax.broadcasted_iota(jnp.int32, (tb, vocab), 1)      # (tb, vocab)
    onehot = (ids == iota).astype(emb_ref.dtype)                # exact in bf16/f32

    out_ref[...] = jnp.dot(
        onehot, emb_ref[...], preferred_element_type=jnp.float32
    ).astype(out_ref.dtype)


# ----------------------------------------------------------------------------
# Path B: large-vocab DMA row gather (ids scalar-prefetched, table stays in HBM).
# ----------------------------------------------------------------------------
def _emb_gather_kernel(ids_ref, table_hbm, out_ref, sem):
    # ids_ref   : SMEM (n_pad,) int32         (scalar prefetch)
    # table_hbm : HBM  (vocab, hidden)        (memory_space=pl.ANY, no auto-DMA)
    # out_ref   : VMEM (token_block, hidden)
    # sem       : DMA semaphores (n_inflight,)
    tb = out_ref.shape[0]
    n_inflight = sem.shape[0]
    nprime = min(n_inflight, tb)
    base = pl.program_id(0) * tb

    def _copy(t):
        row = ids_ref[base + t]
        return pltpu.make_async_copy(
            table_hbm.at[pl.ds(row, 1), :],
            out_ref.at[pl.ds(t, 1), :],
            sem.at[t % n_inflight],
        )

    # Prime the pipeline with nprime row DMAs in flight.
    @pl.loop(0, nprime)
    def _(t):
        _copy(t).start()

    # Steady state: wait row t (frees its semaphore slot), then launch row t+nprime.
    @pl.loop(0, tb)
    def _(t):
        _copy(t).wait()

        @pl.when(t + nprime < tb)
        def _():
            _copy(t + nprime).start()


# ----------------------------------------------------------------------------
# Wrapper
# ----------------------------------------------------------------------------
def _round_up(x, m):
    return (x + m - 1) // m * m


def _pick_hidden_block(hidden):
    if hidden <= 512:
        return hidden
    for cand in (512, 256, 128):   # 256-multiples preferred for 2x256 MXUs
        if hidden % cand == 0:
            return cand
    return hidden                   # not 128-divisible -> must use full dim


def token_embedding(ids, emb_table, *, token_block=256, hidden_block=None,
                    path=None, small_vocab_threshold=2048, n_inflight_dma=8):
    """Pallas equivalent of TokenEmbedding.forward (nn.Embedding gather)."""
    batch, seq = ids.shape
    vocab, hidden = emb_table.shape
    dsize = jnp.dtype(emb_table.dtype).itemsize

    if path is None:
        path = "onehot" if vocab <= small_vocab_threshold else "gather"

    n_tok = batch * seq
    flat_ids = jnp.clip(ids.reshape(n_tok).astype(jnp.int32), 0, vocab - 1)
    # TODO(synk): PyTorch nn.Embedding raises on out-of-range ids; here they are clamped.

    # Shrink token_block for small inputs so we usually need no padding (and hence
    # no padded-output slice copy afterwards).
    token_block = max(8, min(token_block, _round_up(n_tok, 8)))
    pad = (-n_tok) % token_block
    if pad:
        flat_ids = jnp.concatenate([flat_ids, jnp.zeros((pad,), jnp.int32)], axis=0)
    n_pad = n_tok + pad
    n_tok_blocks = n_pad // token_block

    if path == "onehot":
        if hidden_block is None:
            hidden_block = _pick_hidden_block(hidden)
        assert hidden % hidden_block == 0
        assert hidden_block == hidden or hidden_block % 128 == 0
        assert token_block % 8 == 0

        ids2d = flat_ids.reshape(n_pad, 1)

        # Grid: hidden-chunk axis OUTER (slowest), token axis INNER -> the table chunk
        # block index is identical between consecutive steps, so Pallas does not re-DMA
        # it per token block; the table makes exactly one pass over HBM.
        grid = (hidden // hidden_block, n_tok_blocks)

        # VMEM estimate: double-buffered table chunk + double-buffered output tile
        # + ids + slack.  Only request a limit if we exceed the default scoped VMEM,
        # and cap at 56 MiB so it stays safe on v7x (64 MiB physical per TC).
        vmem_need = (2 * vocab * hidden_block * dsize
                     + 2 * token_block * hidden_block * dsize
                     + 2 * token_block * 4 + (2 << 20))
        cp_kwargs = dict(dimension_semantics=("arbitrary", "parallel"))
        if vmem_need > (24 << 20):
            cp_kwargs["vmem_limit_bytes"] = int(min(vmem_need * 5 // 4, 56 << 20))

        out_flat = pl.pallas_call(
            _emb_onehot_kernel,
            out_shape=jax.ShapeDtypeStruct((n_pad, hidden), emb_table.dtype),
            grid_spec=pltpu.PrefetchScalarGridSpec(
                num_scalar_prefetch=0,
                grid=grid,
                in_specs=[
                    # token ids: one (token_block, 1) block per inner (token) step
                    pl.BlockSpec((token_block, 1), lambda j, i: (i, 0)),
                    # table: full vocab, one hidden-column chunk per outer step;
                    # constant across the inner token axis -> no re-DMA
                    pl.BlockSpec((vocab, hidden_block), lambda j, i: (0, j)),
                ],
                out_specs=pl.BlockSpec((token_block, hidden_block),
                                       lambda j, i: (i, j)),
            ),
            compiler_params=pltpu.CompilerParams(**cp_kwargs),
        )(ids2d, emb_table)

    else:  # "gather" path: table never enters VMEM wholesale; only needed rows move.
        n_inflight = max(1, min(n_inflight_dma, token_block))
        out_flat = pl.pallas_call(
            _emb_gather_kernel,
            out_shape=jax.ShapeDtypeStruct((n_pad, hidden), emb_table.dtype),
            grid_spec=pltpu.PrefetchScalarGridSpec(
                num_scalar_prefetch=1,                 # flat ids -> SMEM
                grid=(n_tok_blocks,),
                in_specs=[pl.BlockSpec(memory_space=pl.ANY)],   # table stays in HBM
                out_specs=pl.BlockSpec((token_block, hidden),
                                       lambda i, ids: (i, 0)),
                scratch_shapes=[pltpu.SemaphoreType.DMA((n_inflight,))],
            ),
            compiler_params=pltpu.CompilerParams(
                dimension_semantics=("arbitrary",)),
        )(flat_ids, emb_table)

    if pad:
        # Only materializes a copy when padding was unavoidable.
        out_flat = out_flat[:n_tok]
    return out_flat.reshape(batch, seq, hidden)


def init_token_embedding_params(key, vocab_size, hidden_dim, pad_token_id):
    # nn.Embedding init: N(0, 1), with the padding_idx row zeroed.
    w = jax.random.normal(key, (vocab_size, hidden_dim), dtype=jnp.float32)
    w = w.at[pad_token_id].set(0.0)
    return w
    # TODO(synk): padding_idx gradient masking (training-time behavior) is not
    # reproduced here; forward-pass semantics match because the pad row is zero.


if __name__ == "__main__":
    vocab_size = 32
    hidden_dim = 128
    pad_token_id = 0
    batch, seq = 2, 8

    key = jax.random.PRNGKey(0)
    k_w, k_ids = jax.random.split(key)

    emb_table = init_token_embedding_params(k_w, vocab_size, hidden_dim, pad_token_id)

    ids = jax.random.randint(k_ids, (batch, seq), 0, vocab_size, dtype=jnp.int32)
    # force a few padding tokens so the zeroed pad row is exercised
    ids = ids.at[0, 0].set(pad_token_id)
    ids = ids.at[1, 3].set(pad_token_id)

    # reference: plain JAX gather (== PyTorch nn.Embedding forward)
    ref = emb_table[ids.reshape(-1)].reshape(batch, seq, hidden_dim)

    # small-vocab fast path (auto-dispatched for this vocab, forced here for clarity)
    out_onehot = jax.block_until_ready(token_embedding(ids, emb_table, path="onehot"))
    # large-vocab DMA-gather path (forced so both paths are exercised)
    out_gather = jax.block_until_ready(token_embedding(ids, emb_table, path="gather"))

    for out in (out_onehot, out_gather):
        assert out.shape == (batch, seq, hidden_dim)
        assert out.dtype == emb_table.dtype
        assert jnp.allclose(out, ref), "mismatch vs reference embedding lookup"
        assert jnp.all(out[0, 0] == 0.0) and jnp.all(out[1, 3] == 0.0)

    print("KERNEL_OK")
</pallas_src>

<mosaic_0001>
module attributes {stable_mosaic.version = 11 : i64} {
  func.func @_emb_onehot_kernel(%arg0: i32, %arg1: i32, %arg2: memref<16x1xi32, #tpu.memory_space<vmem>>, %arg3: memref<32x128xf32, #tpu.memory_space<vmem>>, %arg4: memref<16x128xf32, #tpu.memory_space<vmem>>) attributes {dimension_semantics = [#tpu.dimension_semantics<arbitrary>, #tpu.dimension_semantics<parallel>], iteration_bounds = array<i64: 1, 1>, scalar_prefetch = 0 : i64, scratch_operands = 0 : i64, tpu.core_type = #tpu.core_type<tc>, window_params = [{transform_indices = @transform_0, window_bounds = array<i64: 16, 1>}, {transform_indices = @transform_1, window_bounds = array<i64: 32, 128>}, {transform_indices = @transform_2, window_bounds = array<i64: 16, 128>}]} {
    %c0 = arith.constant 0 : index
    %c0_0 = arith.constant 0 : index
    %0 = vector.load %arg2[%c0, %c0_0] : memref<16x1xi32, #tpu.memory_space<vmem>>, vector<16x1xi32>
    %1 = tpu.iota {dimensions = array<i32: 1>} : vector<16x32xi32>
    %2 = vector.broadcast %0 : vector<16x1xi32> to vector<16x32xi32>
    %3 = arith.cmpi eq, %2, %1 : vector<16x32xi32>
    %4 = arith.extui %3 : vector<16x32xi1> to vector<16x32xi32>
    %5 = arith.sitofp %4 : vector<16x32xi32> to vector<16x32xf32>
    %c0_1 = arith.constant 0 : index
    %c0_2 = arith.constant 0 : index
    %6 = vector.load %arg3[%c0_1, %c0_2] : memref<32x128xf32, #tpu.memory_space<vmem>>, vector<32x128xf32>
    %cst = arith.constant dense<0.000000e+00> : vector<16x128xf32>
    %7 = tpu.matmul %5, %6, %cst {dimension_numbers = #tpu.dot_dimension_numbers<[1], [0], [0], [1], [0, 0, 1, 1], [], []>} : vector<16x32xf32>, vector<32x128xf32>, vector<16x128xf32> -> vector<16x128xf32>
    %c0_3 = arith.constant 0 : index
    %c0_4 = arith.constant 0 : index
    %8 = vector.load %arg4[%c0_3, %c0_4] : memref<16x128xf32, #tpu.memory_space<vmem>>, vector<16x128xf32>
    tpu.vector_store %arg4[%c0_3, %c0_4], %7 {strides = array<i32>} : memref<16x128xf32, #tpu.memory_space<vmem>>, vector<16x128xf32>,
    return
  }
  func.func @transform_0(%arg0: i32, %arg1: i32) -> (i32, i32) {
    %c0_i32 = arith.constant 0 : i32
    %c0_i32_0 = arith.constant 0 : i32
    return %arg1, %c0_i32 : i32, i32
  }
  func.func @transform_1(%arg0: i32, %arg1: i32) -> (i32, i32) {
    %c0_i32 = arith.constant 0 : i32
    %c0_i32_0 = arith.constant 0 : i32
    return %c0_i32, %arg0 : i32, i32
  }
  func.func @transform_2(%arg0: i32, %arg1: i32) -> (i32, i32) {
    %c0_i32 = arith.constant 0 : i32
    return %arg1, %arg0 : i32, i32
  }
}

</mosaic_0001>

<llo_original>
// kernel: tpu_custom_call.1
$region0: #{tpu_custom_call.1}
  #allocation0 [shape = 'u32[]', space=smem, size = 0x4, offset = 0x4, fixed_abs, tag = 'smem constant byte address 0x4 - core index']
  #allocation1 [shape = 'u32[144,128]{1,0:T(1,128)}', space=vmem, size = 0x12000, scoped, tag = 'internal scratch']
  %s0 = inlined_call_operand.vmem [shape: s32[16,1], index: 0, kind: input, shape index: {}]
  %s1 = inlined_call_operand.hbm [shape: f32[32,128], index: 1, kind: input, shape index: {}]
  %s2 = inlined_call_operand.hbm [shape: f32[16,128], index: 2, kind: output, shape index: {}]
  %s3 = sld [smem:[#allocation0]]
  $region22: #{tpu_custom_call.1} parent=0
    _
  %s5 = ssub.s32 1, %s3
  %s6 = scalar_select 0, %s5, %s3
  $region1: #{tpu_custom_call.1} parent=0
    #allocation2 [shape = 'u8[16384]{0}', space=vmem, size = 0x4000, scoped, tag = 'input window, operand 1, single buffered']
    #allocation3 [shape = 's32[1]{0}', space=sflag, size = 0x4, scoped, tag = 'scoped memory for tpu_custom_call.1']
    #allocation4 [shape = 's32[1]{0}', space=sflag, size = 0x4, scoped, tag = 'scoped memory for tpu_custom_call.1']
    #allocation5 [shape = 'u8[8192]{0}', space=vmem, size = 0x2000, scoped, tag = 'output window, operand 0, single buffered']
    %7 = vsyncpa [#allocation3], 0
    %8 = vsyncpa [#allocation4], 0
    // Predicated region
    $region2: #{tpu_custom_call.1} parent=1 // pred_check
      _
    $region3: #{tpu_custom_call.1} parent=1 // pred_check_branch
      %10 = sbr.rel (0) target = $region5
    $region4: #{tpu_custom_call.1} parent=1 // pred_region
      _
    $region5: #{tpu_custom_call.1} parent=1 // pred_fallthru
      _
    // Predicated region
    $region6: #{tpu_custom_call.1} parent=1 // pred_check
      _
    $region7: #{tpu_custom_call.1} parent=1 // pred_check_branch
      %12 = sbr.rel (0) target = $region9
    $region8: #{tpu_custom_call.1} parent=1 // pred_region
      %s14 = ssub.s32 512, 512
      %15 = vsyncadd [#allocation3], %s14
      %s16 = sshll.u32 [#allocation2], 4
      %s17 = int_to_ptr.vmem [resolvable:$true] %s16
      %22 = dma.hbm_to_vmem [thread:$0]  %s1, 512, %s17, [#allocation3], 128, 128, 8
    $region9: #{tpu_custom_call.1} parent=1 // pred_fallthru
      _
    // Predicated region
    $region10: #{tpu_custom_call.1} parent=1 // pred_check
      _
    $region11: #{tpu_custom_call.1} parent=1 // pred_check_branch
      %24 = sbr.rel (0) target = $region13
    $region12: #{tpu_custom_call.1} parent=1 // pred_region
      %25 = dma.done [#allocation3], 512
    $region13: #{tpu_custom_call.1} parent=1 // pred_fallthru
      _
    %v26 = vld [vmem:[%s0] sm:$0xff]
    %v27 = vld [vmem:[%s0 + $0x8] sm:$0xff]
    %v28 = vlaneseq
    %v29 = vand.u32 %v28, 127
    %30 = vset.pattern.permute.xlu0 0
    %31 = vperm.xlu0 %30, %v26
    %v32 = vpop.permute.xlu0 %31
    %33 = vset.pattern.permute.xlu0 0
    %34 = vperm.xlu0 %33, %v27
    %v35 = vpop.permute.xlu0 %34
    %vm36 = vcmp.eq.s32.totalorder %v32, %v29
    %vm37 = vcmp.eq.s32.totalorder %v35, %v29
    %v38 = vsel %vm36, 1, 0
    %v39 = vsel %vm37, 1, 0
    %v40 = vcvt.s32.f32 %v38
    %v41 = vcvt.s32.f32 %v39
    %v42 = vld [vmem:[#allocation2] sm:$0xff]
    %v43 = vld [vmem:[#allocation2 + $0x8] sm:$0xff]
    %v44 = vld [vmem:[#allocation2 + $0x10] sm:$0xff]
    %v45 = vld [vmem:[#allocation2 + $0x18] sm:$0xff]
    %vm46 = vcmask 261120
    %v48 = vsel %vm46, %v40, 0
    %v51 = vsel %vm46, %v41, 0
    %53 = vmatprep.subr.mxu0 0.0
    %54 = vmatpush1.msra.mxu0 %v42
    %55 = vmatprep.subr.mxu0 0.0
    %56 = vmatpush1.msra.mxu0 %v43
    %57 = vmatprep.subr.mxu0 0.0
    %58 = vmatpush1.msra.mxu0 %v44
    %59 = vmatprep.subr.mxu0 0.0
    %60 = vmatpush1.msra.mxu0 %v45
    %61 = vmatprep.subr.mxu0 0.0
    %62 = vmatpush1.msra.mxu0 0.0
    %63 = vmatprep.subr.mxu0 0.0
    %64 = vmatpush1.msra.mxu0 0.0
    %65 = vmatprep.subr.mxu0 0.0
    %66 = vmatpush1.msra.mxu0 0.0
    %67 = vmatprep.subr.mxu0 0.0
    %68 = vmatpush1.msra.mxu0 0.0
    %69 = vmatprep.subr.mxu0 0.0
    %70 = vmatpush1.msra.mxu0 0.0
    %71 = vmatprep.subr.mxu0 0.0
    %72 = vmatpush1.msra.mxu0 0.0
    %73 = vmatprep.subr.mxu0 0.0
    %74 = vmatpush1.msra.mxu0 0.0
    %75 = vmatprep.subr.mxu0 0.0
    %76 = vmatpush1.msra.mxu0 0.0
    %77 = vmatprep.subr.mxu0 0.0
    %78 = vmatpush1.msra.mxu0 0.0
    %79 = vmatprep.subr.mxu0 0.0
    %80 = vmatpush1.msra.mxu0 0.0
    %81 = vmatprep.subr.mxu0 0.0
    %82 = vmatpush1.msra.mxu0 0.0
    %83 = vmatprep.subr.mxu0 0.0
    %84 = vmatpush1.msra.mxu0 0.0
    %85 = vmatprep.subr.mxu0 0.0
    %86 = vmatpush1.msra.mxu0 0.0
    %87 = vmatprep.subr.mxu0 0.0
    %88 = vmatpush1.msra.mxu0 0.0
    %89 = vmatprep.subr.mxu0 0.0
    %90 = vmatpush1.msra.mxu0 0.0
    %91 = vmatprep.subr.mxu0 0.0
    %92 = vmatpush1.msra.mxu0 0.0
    %93 = vmatprep.subr.mxu0 0.0
    %94 = vmatpush1.msra.mxu0 0.0
    %95 = vmatprep.subr.mxu0 0.0
    %96 = vmatpush1.msra.mxu0 0.0
    %97 = vmatprep.subr.mxu0 0.0
    %98 = vmatpush1.msra.mxu0 0.0
    %99 = vmatprep.subr.mxu0 0.0
    %100 = vmatpush1.msra.mxu0 0.0
    %101 = vmatprep.subr.mxu0 0.0
    %102 = vmatpush1.msra.mxu0 0.0
    %103 = vmatprep.subr.mxu0 0.0
    %104 = vmatpush1.msra.mxu0 0.0
    %105 = vmatprep.subr.mxu0 0.0
    %106 = vmatpush1.msra.mxu0 0.0
    %107 = vmatprep.subr.mxu0 0.0
    %108 = vmatpush1.msra.mxu0 0.0
    %109 = vmatprep.subr.mxu0 0.0
    %110 = vmatpush1.msra.mxu0 0.0
    %111 = vmatprep.subr.mxu0 0.0
    %112 = vmatpush1.msra.mxu0 0.0
    %113 = vmatprep.subr.mxu0 0.0
    %114 = vmatpush1.msra.mxu0 0.0
    %115 = vmatprep.subr.mxu0 0.0
    %116 = vmatpush1.msra.mxu0 0.0
    %117 = vmatprep.mubr.f32.mxu0 0.0
    %118 = vmatmul.mubr.f32.gmra.mrb[0].mxu0 %v48
    %v119 = vpop.f32.mrb[0].mxu0
    %v120 = vadd.f32 0.0, %v119
    %v121 = vpop.f32.mrb[0].mxu0
    %122 = vmatprep.mubr.f32.mxu0 0.0
    %123 = vmatmul.mubr.f32.gmra.mrb[0].mxu0 %v51
    %v124 = vpop.f32.mrb[0].mxu0
    %v125 = vadd.f32 0.0, %v124
    %v126 = vpop.f32.mrb[0].mxu0
    %127 = vdwg.mxu0
    %128 = vst [vmem:[#allocation5] sm:$0xff] %v120
    %129 = vst [vmem:[#allocation5 + $0x8] sm:$0xff] %v125
    // Predicated region
    $region14: #{tpu_custom_call.1} parent=1 // pred_check
      _
    $region15: #{tpu_custom_call.1} parent=1 // pred_check_branch
      %131 = sbr.rel (0) target = $region17
    $region16: #{tpu_custom_call.1} parent=1 // pred_region
      %s133 = ssub.s32 256, 256
      %134 = vsyncadd [#allocation4], %s133
      %s135 = sshll.u32 [#allocation5], 4
      %s136 = int_to_ptr.vmem [resolvable:$true] %s135
      %141 = dma.vmem_to_hbm [thread:$0]  %s136, 256, %s2, [#allocation4], 128, 128, 8
    $region17: #{tpu_custom_call.1} parent=1 // pred_fallthru
      _
    // Predicated region
    $region18: #{tpu_custom_call.1} parent=1 // pred_check
      _
    $region19: #{tpu_custom_call.1} parent=1 // pred_check_branch
      %143 = sbr.rel (0) target = $region21
    $region20: #{tpu_custom_call.1} parent=1 // pred_region
      %144 = dma.done [#allocation4], 256
    $region21: #{tpu_custom_call.1} parent=1 // pred_fallthru
      _
    %145 = vsyncpa [#allocation3], 1
    %146 = vsyncpa [#allocation4], 1

</llo_original>
